<compile_context>
chip_gen: v7x
topology: tpu7x:2x2x1
jax: 0.10.0
libtpu: 0.0.40
codegen_flags: <defaults>
</compile_context>

<pallas_src>
import jax
import jax.numpy as jnp
from jax import lax
from jax.experimental import pallas as pl
from jax.experimental.pallas import tpu as pltpu


def channel_attention_kernel(x_ref, w1_ref, w2_ref, o_ref):
    # One batch element per grid step: (C, HW), C on sublanes, HW on lanes.
    x = x_ref[0]
    c, hw = x.shape
    xf = x.astype(jnp.float32)

    # Dual global pooling over the lane-dense spatial axis -> (C, 1).
    avg = jnp.sum(xf, axis=-1, keepdims=True) * (1.0 / hw)   # AdaptiveAvgPool2d(1)
    mx = jnp.max(xf, axis=-1, keepdims=True)                 # AdaptiveMaxPool2d(1)

    # Stack the two pooled columns so the shared bias-free MLP
    # (Conv1x1 -> ReLU -> Conv1x1) runs once on both.
    p = jnp.concatenate([avg, mx], axis=1)                   # (C, 2)

    w1 = w1_ref[...]                                         # (hidden, C)
    w2 = w2_ref[...]                                         # (C, hidden)

    # Plain A @ B contractions: LHS contracts its lane dim, RHS its sublane
    # dim -> no in-kernel transpose of the weight tiles, and the result stays
    # channel-on-sublane.
    h = lax.dot_general(w1, p, (((1,), (0,)), ((), ())),
                        preferred_element_type=jnp.float32)  # (hidden, 2)
    h = jnp.maximum(h, 0.0)                                  # ReLU
    o = lax.dot_general(w2, h, (((1,), (0,)), ((), ())),
                        preferred_element_type=jnp.float32)  # (C, 2)

    # channel_att = sigmoid(mlp(avg) + mlp(max)), kept as a (C, 1) column so
    # the scale of x is a per-sublane lane-broadcast (no relayout).
    att = jax.nn.sigmoid(o[:, 0:1] + o[:, 1:2])              # (C, 1)
    o_ref[0] = (xf * att).astype(o_ref.dtype)


def channel_attention_pallas(x, w1, w2):
    """x: (N, C, H, W); w1: (hidden, C); w2: (C, hidden)."""
    N, C, H, W = x.shape
    HW = H * W
    # Layout plumbing only: lane-dense spatial axis (HW multiple of 128 here).
    x2 = x.reshape(N, C, HW)

    out = pl.pallas_call(
        channel_attention_kernel,
        out_shape=jax.ShapeDtypeStruct((N, C, HW), x.dtype),
        grid_spec=pltpu.PrefetchScalarGridSpec(
            num_scalar_prefetch=0,
            grid=(N,),                                       # batch-parallel axis
            in_specs=[
                pl.BlockSpec((1, C, HW), lambda n: (n, 0, 0)),
                pl.BlockSpec(w1.shape, lambda n: (0, 0)),    # resident across steps
                pl.BlockSpec(w2.shape, lambda n: (0, 0)),
            ],
            out_specs=pl.BlockSpec((1, C, HW), lambda n: (n, 0, 0)),
        ),
        compiler_params=pltpu.CompilerParams(
            dimension_semantics=("parallel",)),
    )(x2, w1, w2)
    return out.reshape(N, C, H, W)


def channel_attention_reference(x, w1, w2):
    """Pure-JAX reference replicating the PyTorch forward."""
    avg = jnp.mean(x, axis=(2, 3))                           # (N, C)
    mx = jnp.max(x, axis=(2, 3))                             # (N, C)

    def mlp(v):
        return jnp.maximum(v @ w1.T, 0.0) @ w2.T

    att = jax.nn.sigmoid(mlp(avg) + mlp(mx))                 # (N, C)
    return x * att[:, :, None, None]


if __name__ == "__main__":
    # ChannelAttentionAuthentic(channels=32, reduction_ratio=16) -> hidden = 2.
    N, C, H, W = 2, 32, 16, 16
    reduction = 16
    hidden = C // reduction

    key = jax.random.PRNGKey(0)
    k0, k1, k2 = jax.random.split(key, 3)
    x = jax.random.normal(k0, (N, C, H, W), dtype=jnp.float32)
    # Conv2d(C -> hidden, k=1, bias=False) and Conv2d(hidden -> C, k=1, bias=False)
    w1 = 0.3 * jax.random.normal(k1, (hidden, C), dtype=jnp.float32)
    w2 = 0.3 * jax.random.normal(k2, (C, hidden), dtype=jnp.float32)

    out = jax.block_until_ready(channel_attention_pallas(x, w1, w2))

    ref = channel_attention_reference(x, w1, w2)
    assert out.shape == ref.shape and out.dtype == ref.dtype
    assert jnp.allclose(out, ref, atol=1e-5, rtol=1e-5), "Pallas output mismatch vs reference"

    print("KERNEL_OK")
</pallas_src>

<mosaic_0001>
module attributes {stable_mosaic.version = 11 : i64} {
  func.func @channel_attention_kernel(%arg0: i32, %arg1: memref<1x32x256xf32, #tpu.memory_space<vmem>>, %arg2: memref<2x32xf32, #tpu.memory_space<vmem>>, %arg3: memref<32x2xf32, #tpu.memory_space<vmem>>, %arg4: memref<1x32x256xf32, #tpu.memory_space<vmem>>) attributes {dimension_semantics = [#tpu.dimension_semantics<parallel>], iteration_bounds = array<i64: 2>, scalar_prefetch = 0 : i64, scratch_operands = 0 : i64, tpu.core_type = #tpu.core_type<tc>, window_params = [{transform_indices = @transform_0, window_bounds = array<i64: 1, 32, 256>}, {pipeline_mode = #tpu.pipeline_mode<synchronous>, transform_indices = @transform_1, window_bounds = array<i64: 2, 32>}, {pipeline_mode = #tpu.pipeline_mode<synchronous>, transform_indices = @transform_2, window_bounds = array<i64: 32, 2>}, {transform_indices = @transform_3, window_bounds = array<i64: 1, 32, 256>}]} {
    %c0 = arith.constant 0 : index
    %c0_0 = arith.constant 0 : index
    %c0_1 = arith.constant 0 : index
    %0 = vector.load %arg1[%c0, %c0_0, %c0_1] : memref<1x32x256xf32, #tpu.memory_space<vmem>>, vector<1x32x256xf32>
    %1 = vector.shape_cast %0 : vector<1x32x256xf32> to vector<32x256xf32>
    %cst = arith.constant dense<0.000000e+00> : vector<32xf32>
    %2 = vector.multi_reduction <add>, %1, %cst [1] : vector<32x256xf32> to vector<32xf32>
    %3 = vector.shape_cast %2 : vector<32xf32> to vector<32x1xf32>
    %cst_2 = arith.constant 3.906250e-03 : f32
    %4 = vector.broadcast %cst_2 : f32 to vector<32x1xf32>
    %5 = arith.mulf %3, %4 : vector<32x1xf32>
    %cst_3 = arith.constant dense<0xFF800000> : vector<32xf32>
    %6 = vector.multi_reduction <maximumf>, %1, %cst_3 [1] : vector<32x256xf32> to vector<32xf32>
    %7 = vector.shape_cast %6 : vector<32xf32> to vector<32x1xf32>
    %8 = tpu.concatenate %5, %7 in 1 : vector<32x1xf32>, vector<32x1xf32> -> vector<32x2xf32>
    %c0_4 = arith.constant 0 : index
    %c0_5 = arith.constant 0 : index
    %9 = vector.load %arg2[%c0_4, %c0_5] : memref<2x32xf32, #tpu.memory_space<vmem>>, vector<2x32xf32>
    %c0_6 = arith.constant 0 : index
    %c0_7 = arith.constant 0 : index
    %10 = vector.load %arg3[%c0_6, %c0_7] : memref<32x2xf32, #tpu.memory_space<vmem>>, vector<32x2xf32>
    %cst_8 = arith.constant dense<0.000000e+00> : vector<2x2xf32>
    %11 = tpu.matmul %9, %8, %cst_8 {dimension_numbers = #tpu.dot_dimension_numbers<[1], [0], [0], [1], [0, 0, 1, 1], [], []>} : vector<2x32xf32>, vector<32x2xf32>, vector<2x2xf32> -> vector<2x2xf32>
    %cst_9 = arith.constant 0.000000e+00 : f32
    %12 = vector.broadcast %cst_9 : f32 to vector<2x2xf32>
    %13 = arith.maximumf %11, %12 : vector<2x2xf32>
    %cst_10 = arith.constant dense<0.000000e+00> : vector<32x2xf32>
    %14 = tpu.matmul %10, %13, %cst_10 {dimension_numbers = #tpu.dot_dimension_numbers<[1], [0], [0], [1], [0, 0, 1, 1], [], []>} : vector<32x2xf32>, vector<2x2xf32>, vector<32x2xf32> -> vector<32x2xf32>
    %15 = vector.extract_strided_slice %14 {offsets = [0, 0], sizes = [32, 1], strides = [1, 1]} : vector<32x2xf32> to vector<32x1xf32>
    %16 = vector.extract_strided_slice %14 {offsets = [0, 1], sizes = [32, 1], strides = [1, 1]} : vector<32x2xf32> to vector<32x1xf32>
    %17 = arith.addf %15, %16 : vector<32x1xf32>
    %18 = arith.negf %17 : vector<32x1xf32>
    %19 = math.exp %18 : vector<32x1xf32>
    %cst_11 = arith.constant 1.000000e+00 : f32
    %20 = vector.broadcast %cst_11 : f32 to vector<32x1xf32>
    %21 = arith.addf %20, %19 : vector<32x1xf32>
    %22 = arith.divf %20, %21 : vector<32x1xf32>
    %23 = vector.broadcast %22 : vector<32x1xf32> to vector<32x256xf32>
    %24 = arith.mulf %1, %23 : vector<32x256xf32>
    %c0_12 = arith.constant 0 : index
    %c0_13 = arith.constant 0 : index
    %c0_14 = arith.constant 0 : index
    %25 = vector.load %arg4[%c0_12, %c0_13, %c0_14] : memref<1x32x256xf32, #tpu.memory_space<vmem>>, vector<1x32x256xf32>
    %26 = vector.shape_cast %25 : vector<1x32x256xf32> to vector<32x256xf32>
    %27 = vector.shape_cast %24 : vector<32x256xf32> to vector<1x32x256xf32>
    tpu.vector_store %arg4[%c0_12, %c0_13, %c0_14], %27 {strides = array<i32>} : memref<1x32x256xf32, #tpu.memory_space<vmem>>, vector<1x32x256xf32>,
    return
  }
  func.func @transform_0(%arg0: i32) -> (i32, i32, i32) {
    %c0_i32 = arith.constant 0 : i32
    %c0_i32_0 = arith.constant 0 : i32
    %c0_i32_1 = arith.constant 0 : i32
    return %arg0, %c0_i32, %c0_i32_0 : i32, i32, i32
  }
  func.func @transform_1(%arg0: i32) -> (i32, i32) {
    %c0_i32 = arith.constant 0 : i32
    %c0_i32_0 = arith.constant 0 : i32
    %c0_i32_1 = arith.constant 0 : i32
    return %c0_i32, %c0_i32_0 : i32, i32
  }
  func.func @transform_2(%arg0: i32) -> (i32, i32) {
    %c0_i32 = arith.constant 0 : i32
    %c0_i32_0 = arith.constant 0 : i32
    %c0_i32_1 = arith.constant 0 : i32
    return %c0_i32, %c0_i32_0 : i32, i32
  }
  func.func @transform_3(%arg0: i32) -> (i32, i32, i32) {
    %c0_i32 = arith.constant 0 : i32
    %c0_i32_0 = arith.constant 0 : i32
    %c0_i32_1 = arith.constant 0 : i32
    return %arg0, %c0_i32, %c0_i32_0 : i32, i32, i32
  }
}

</mosaic_0001>

<llo_original>
// kernel: tpu_custom_call.1
$region0: #{tpu_custom_call.1}
  #allocation0 [shape = 'u32[]', space=smem, size = 0x4, offset = 0x4, fixed_abs, tag = 'smem constant byte address 0x4 - core index']
  #allocation1 [shape = 'u32[144,128]{1,0:T(1,128)}', space=vmem, size = 0x12000, scoped, tag = 'internal scratch']
  %s0 = inlined_call_operand.hbm [shape: f32[2,32,256], index: 0, kind: input, shape index: {}]
  %s1 = inlined_call_operand.vmem [shape: f32[2,32], index: 1, kind: input, shape index: {}]
  %s2 = inlined_call_operand.vmem [shape: f32[32,2], index: 2, kind: input, shape index: {}]
  %s3 = inlined_call_operand.hbm [shape: f32[2,32,256], index: 3, kind: output, shape index: {}]
  %s4 = sld [smem:[#allocation0]]
  $region49: #{tpu_custom_call.1} parent=0
    _
  %s6 = ssub.s32 1, %s4
  %s7 = scalar_select 0, %s6, %s4
  $region1: #{tpu_custom_call.1} parent=0
    #allocation2 [shape = 'u8[65536]{0}', space=vmem, size = 0x10000, scoped, tag = 'input window, operand 0']
    #allocation3 [shape = 's32[2]{0}', space=sflag, size = 0x8, scoped, tag = 'scoped memory for tpu_custom_call.1']
    #allocation4 [shape = 's32[2]{0}', space=sflag, size = 0x8, scoped, tag = 'scoped memory for tpu_custom_call.1']
    #allocation5 [shape = 'u8[65536]{0}', space=vmem, size = 0x10000, scoped, tag = 'output window, operand 0']
    %8 = vsyncpa [#allocation3], 0
    %s9 = scalar_lea.sflag [#allocation3], 1
    %10 = vsyncpa %s9, 0
    %11 = vsyncpa [#allocation4], 0
    %s12 = scalar_lea.sflag [#allocation4], 1
    %13 = vsyncpa %s12, 0
    loop: start=0, step=1, limit=4
    $region2: #{tpu_custom_call.1} parent=1 // loop_pre_header
      _
    $region3: #{tpu_custom_call.1} parent=1 // loop_header
      %s15 = sphi 0, %s19
      %p16 = scmp.ge.s32.totalorder %s15, 4
      %s25 = sphi 0, %s27
      %s28 = sphi 0, %s25
      %s29 = sphi 0, %s28
      %s45 = sphi 0, %s29
      %s49 = sphi 0, %s49
      %s51 = sphi 0, %s49
      %s52 = sphi 0, %s51
      %s66 = sphi 0, %s52
      %s70 = sphi 0, %s70
      %s72 = sphi 0, %s70
      %s73 = sphi 0, %s72
      %s87 = sphi 0, %s73
      %s93 = sphi 0, %s95
      %s96 = sphi 0, %s93
      %s97 = sphi 0, %s96
      %s113 = sphi 0, %s97
    $region4: #{tpu_custom_call.1} parent=1 // loop_header_branch
      %18 = sbr.rel (%p16) target = $region8
    $region5: #{tpu_custom_call.1} parent=1 // loop_body
      %s20 = ssub.s32 %s15, 1
      %s21 = ssub.s32 %s15, 2
      %s22 = sadd.s32 %s15, 1
      %s23 = ssub.s32 %s15, %s22
      %p24 = scmp.eq.s32.totalorder %s23, 0
      %s26 = sadd.s32 %s25, 1
      %s27 = scalar_select %p24, %s25, %s26
      %p30 = pneg %p24
      %p31 = scmp.eq.s32.totalorder %s15, 1
      %p32 = por %p30, %p31
      %p33 = scmp.ne.s32.totalorder %s25, %s28
      %p34 = scmp.eq.s32.totalorder %s15, 0
      %p35 = por %p33, %p34
      %p36 = scmp.ne.s32.totalorder %s25, %s28
      %p37 = scmp.eq.s32.totalorder %s20, 1
      %p38 = por %p36, %p37
      %p39 = scmp.ne.s32.totalorder %s28, %s29
      %p40 = scmp.eq.s32.totalorder %s20, 0
      %p41 = por %p39, %p40
      %p42 = scmp.ne.s32.totalorder %s28, %s29
      %p43 = scmp.eq.s32.totalorder %s21, 1
      %p44 = por %p42, %p43
      %p46 = scmp.ne.s32.totalorder %s29, %s45
      %p47 = scmp.eq.s32.totalorder %s21, 0
      %p48 = por %p46, %p47
      %s50 = sadd.s32 %s49, 1
      %p53 = scmp.eq.s32.totalorder %s15, 1
      %p54 = scmp.ne.s32.totalorder %s49, %s51
      %p55 = scmp.eq.s32.totalorder %s15, 0
      %p56 = por %p54, %p55
      %p57 = scmp.ne.s32.totalorder %s49, %s51
      %p58 = scmp.eq.s32.totalorder %s20, 1
      %p59 = por %p57, %p58
      %p60 = scmp.ne.s32.totalorder %s51, %s52
      %p61 = scmp.eq.s32.totalorder %s20, 0
      %p62 = por %p60, %p61
      %p63 = scmp.ne.s32.totalorder %s51, %s52
      %p64 = scmp.eq.s32.totalorder %s21, 1
      %p65 = por %p63, %p64
      %p67 = scmp.ne.s32.totalorder %s52, %s66
      %p68 = scmp.eq.s32.totalorder %s21, 0
      %p69 = por %p67, %p68
      %s71 = sadd.s32 %s70, 1
      %p74 = scmp.eq.s32.totalorder %s15, 1
      %p75 = scmp.ne.s32.totalorder %s70, %s72
      %p76 = scmp.eq.s32.totalorder %s15, 0
      %p77 = por %p75, %p76
      %p78 = scmp.ne.s32.totalorder %s70, %s72
      %p79 = scmp.eq.s32.totalorder %s20, 1
      %p80 = por %p78, %p79
      %p81 = scmp.ne.s32.totalorder %s72, %s73
      %p82 = scmp.eq.s32.totalorder %s20, 0
      %p83 = por %p81, %p82
      %p84 = scmp.ne.s32.totalorder %s72, %s73
      %p85 = scmp.eq.s32.totalorder %s21, 1
      %p86 = por %p84, %p85
      %p88 = scmp.ne.s32.totalorder %s73, %s87
      %p89 = scmp.eq.s32.totalorder %s21, 0
      %p90 = por %p88, %p89
      %s91 = ssub.s32 %s15, %s22
      %p92 = scmp.eq.s32.totalorder %s91, 0
      %s94 = sadd.s32 %s93, 1
      %s95 = scalar_select %p92, %s93, %s94
      %p98 = pneg %p92
      %p99 = scmp.eq.s32.totalorder %s15, 1
      %p100 = por %p98, %p99
      %p101 = scmp.ne.s32.totalorder %s93, %s96
      %p102 = scmp.eq.s32.totalorder %s15, 0
      %p103 = por %p101, %p102
      %p104 = scmp.ne.s32.totalorder %s93, %s96
      %p105 = scmp.eq.s32.totalorder %s20, 1
      %p106 = por %p104, %p105
      %p107 = scmp.ne.s32.totalorder %s96, %s97
      %p108 = scmp.eq.s32.totalorder %s20, 0
      %p109 = por %p107, %p108
      %p110 = scmp.ne.s32.totalorder %s96, %s97
      %p111 = scmp.eq.s32.totalorder %s21, 1
      %p112 = por %p110, %p111
      %p114 = scmp.ne.s32.totalorder %s97, %s113
      %p115 = scmp.eq.s32.totalorder %s21, 0
      %p116 = por %p114, %p115
      %p117 = scmp.le.s32.totalorder 1, %s15
      %p118 = scmp.lt.s32.totalorder %s15, 3
      %p119 = pnand %p117, %p118
      %p120 = pneg %p119
      // Predicated region
      $region9: #{tpu_custom_call.1} parent=5 // pred_check
        _
      $region10: #{tpu_custom_call.1} parent=5 // pred_check_branch
        %122 = sbr.rel (%p119) target = $region12
      $region11: #{tpu_custom_call.1} parent=5 // pred_region
        %s123 = ssub.s32 %s15, 1
        // Predicated region
        $region13: #{tpu_custom_call.1} parent=11 // pred_check
          %p124 = pneg %p62
        $region14: #{tpu_custom_call.1} parent=11 // pred_check_branch
          %126 = sbr.rel (%p124) target = $region16
        $region15: #{tpu_custom_call.1} parent=11 // pred_region
          _
        $region16: #{tpu_custom_call.1} parent=11 // pred_fallthru
          _
        // Predicated region
        $region17: #{tpu_custom_call.1} parent=11 // pred_check
          %p127 = pneg %p83
        $region18: #{tpu_custom_call.1} parent=11 // pred_check_branch
          %129 = sbr.rel (%p127) target = $region20
        $region19: #{tpu_custom_call.1} parent=11 // pred_region
          _
        $region20: #{tpu_custom_call.1} parent=11 // pred_fallthru
          _
      $region12: #{tpu_custom_call.1} parent=5 // pred_fallthru
        _
      %p130 = scmp.lt.s32.totalorder %s15, 2
      // Predicated region
      $region21: #{tpu_custom_call.1} parent=5 // pred_check
        %p131 = pneg %p130
      $region22: #{tpu_custom_call.1} parent=5 // pred_check_branch
        %133 = sbr.rel (%p131) target = $region24
      $region23: #{tpu_custom_call.1} parent=5 // pred_region
        // Predicated region
        $region25: #{tpu_custom_call.1} parent=23 // pred_check
          %p134 = pneg %p35
        $region26: #{tpu_custom_call.1} parent=23 // pred_check_branch
          %136 = sbr.rel (%p134) target = $region28
        $region27: #{tpu_custom_call.1} parent=23 // pred_region
          %s137 = sand.u32 %s25, 1
          %s138 = scalar_lea.sflag [#allocation3], %s137
          %s139 = sand.u32 %s25, 1
          %s140 = smul.addr %s139, 64
          %s141 = scalar_lea.vmem [#allocation2], %s140
          %s143 = ssub.s32 1024, 1024
          %144 = vsyncadd %s138, %s143
          %s145 = smul.addr %s15, 8
          %s146 = smul.addr %s145, 128
          %s147 = scalar_lea.hbm %s0, %s146
          %s148 = sshll.u32 %s141, 4
          %s149 = int_to_ptr.vmem [resolvable:$true] %s148
          %154 = dma.hbm_to_vmem [thread:$0]  %s147, 1024, %s149, %s138, 256, 256, 16
        $region28: #{tpu_custom_call.1} parent=23 // pred_fallthru
          _
      $region24: #{tpu_custom_call.1} parent=5 // pred_fallthru
        _
      %p155 = scmp.le.s32.totalorder 1, %s15
      %p156 = scmp.lt.s32.totalorder %s15, 3
      %p157 = pnand %p155, %p156
      %p158 = pneg %p157
      // Predicated region
      $region29: #{tpu_custom_call.1} parent=5 // pred_check
        _
      $region30: #{tpu_custom_call.1} parent=5 // pred_check_branch
        %160 = sbr.rel (%p157) target = $region32
      $region31: #{tpu_custom_call.1} parent=5 // pred_region
        %s161 = ssub.s32 %s15, 1
        %s162 = sand.u32 %s28, 1
        %s163 = scalar_lea.sflag [#allocation3], %s162
        %s164 = sand.u32 %s28, 1
        %s165 = smul.addr %s164, 64
        %s166 = scalar_lea.vmem [#allocation2], %s165
        // Predicated region
        $region33: #{tpu_custom_call.1} parent=31 // pred_check
          %p167 = pneg %p41
        $region34: #{tpu_custom_call.1} parent=31 // pred_check_branch
          %169 = sbr.rel (%p167) target = $region36
        $region35: #{tpu_custom_call.1} parent=31 // pred_region
          %170 = dma.done %s163, 1024
        $region36: #{tpu_custom_call.1} parent=31 // pred_fallthru
          _
        %s171 = sand.u32 %s28, 1
        %s172 = scalar_lea.sflag [#allocation3], %s171
        %s173 = sand.u32 %s28, 1
        %s174 = smul.addr %s173, 64
        %s175 = scalar_lea.vmem [#allocation2], %s174
        %p176 = pneg %p41
        %p177 = pneg %p38
        %p178 = pneg %p62
        %p179 = pneg %p59
        %p180 = pneg %p83
        %p181 = pneg %p80
        %p182 = pneg %p109
        %p183 = pneg %p106
        %s184 = sand.u32 %s96, 1
        %s185 = scalar_lea.sflag [#allocation4], %s184
        %s186 = sand.u32 %s96, 1
        %s187 = smul.addr %s186, 64
        %s188 = scalar_lea.vmem [#allocation5], %s187
        %v189 = vld [vmem:[%s166] sm:$0xff]
        %v190 = vld [vmem:[%s166 + $0x8] sm:$0xff]
        %v191 = vld [vmem:[%s166 + $0x10] sm:$0xff]
        %v192 = vld [vmem:[%s166 + $0x18] sm:$0xff]
        %v193 = vld [vmem:[%s166 + $0x20] sm:$0xff]
        %v194 = vld [vmem:[%s166 + $0x28] sm:$0xff]
        %v195 = vld [vmem:[%s166 + $0x30] sm:$0xff]
        %v196 = vld [vmem:[%s166 + $0x38] sm:$0xff]
        %v197 = vadd.f32 %v189, %v190
        %198 = vadd.xlane.f32.xlu0 %v197
        %v199 = vpop.xlane.xlu0 %198
        %v200 = vadd.f32 %v191, %v192
        %201 = vadd.xlane.f32.xlu0 %v200
        %v202 = vpop.xlane.xlu0 %201
        %v203 = vadd.f32 %v193, %v194
        %204 = vadd.xlane.f32.xlu0 %v203
        %v205 = vpop.xlane.xlu0 %204
        %v206 = vadd.f32 %v195, %v196
        %207 = vadd.xlane.f32.xlu0 %v206
        %v208 = vpop.xlane.xlu0 %207
        %v209 = vmul.f32 %v199, 0.00390625
        %v210 = vmul.f32 %v202, 0.00390625
        %v211 = vmul.f32 %v205, 0.00390625
        %v212 = vmul.f32 %v208, 0.00390625
        %v213 = vmax.f32 %v189, %v190
        %214 = vmax.xlane.f32.xlu0 %v213
        %v215 = vpop.xlane.xlu0 %214
        %v216 = vmax.f32 %v191, %v192
        %217 = vmax.xlane.f32.xlu0 %v216
        %v218 = vpop.xlane.xlu0 %217
        %v219 = vmax.f32 %v193, %v194
        %220 = vmax.xlane.f32.xlu0 %v219
        %v221 = vpop.xlane.xlu0 %220
        %v222 = vmax.f32 %v195, %v196
        %223 = vmax.xlane.f32.xlu0 %v222
        %v224 = vpop.xlane.xlu0 %223
        %vm225 = vcmask 7168
        %v226 = vsel %vm225, %v209, %v215
        %v227 = vsel %vm225, %v210, %v218
        %v228 = vsel %vm225, %v211, %v221
        %v229 = vsel %vm225, %v212, %v224
        %v230 = vld [vmem:[%s1] sm:$0x3]
        %v231 = vld [vmem:[%s2] sm:$0xff]
        %v232 = vld [vmem:[%s2 + $0x8] sm:$0xff]
        %v233 = vld [vmem:[%s2 + $0x10] sm:$0xff]
        %v234 = vld [vmem:[%s2 + $0x18] sm:$0xff]
        %vm235 = vcmask 261120
        %v237 = vsel %vm235, %v230, 0
        %239 = vmatprep.subr.mxu0 0.0
        %240 = vmatpush1.msra.mxu0 %v226
        %241 = vmatprep.subr.mxu0 0.0
        %242 = vmatpush1.msra.mxu0 %v227
        %243 = vmatprep.subr.mxu0 0.0
        %244 = vmatpush1.msra.mxu0 %v228
        %245 = vmatprep.subr.mxu0 0.0
        %246 = vmatpush1.msra.mxu0 %v229
        %247 = vmatprep.subr.mxu0 0.0
        %248 = vmatpush1.msra.mxu0 0.0
        %249 = vmatprep.subr.mxu0 0.0
        %250 = vmatpush1.msra.mxu0 0.0
        %251 = vmatprep.subr.mxu0 0.0
        %252 = vmatpush1.msra.mxu0 0.0
        %253 = vmatprep.subr.mxu0 0.0
        %254 = vmatpush1.msra.mxu0 0.0
        %255 = vmatprep.subr.mxu0 0.0
        %256 = vmatpush1.msra.mxu0 0.0
        %257 = vmatprep.subr.mxu0 0.0
        %258 = vmatpush1.msra.mxu0 0.0
        %259 = vmatprep.subr.mxu0 0.0
        %260 = vmatpush1.msra.mxu0 0.0
        %261 = vmatprep.subr.mxu0 0.0
        %262 = vmatpush1.msra.mxu0 0.0
        %263 = vmatprep.subr.mxu0 0.0
        %264 = vmatpush1.msra.mxu0 0.0
        %265 = vmatprep.subr.mxu0 0.0
        %266 = vmatpush1.msra.mxu0 0.0
        %267 = vmatprep.subr.mxu0 0.0
        %268 = vmatpush1.msra.mxu0 0.0
        %269 = vmatprep.subr.mxu0 0.0
        %270 = vmatpush1.msra.mxu0 0.0
        %271 = vmatprep.subr.mxu0 0.0
        %272 = vmatpush1.msra.mxu0 0.0
        %273 = vmatprep.subr.mxu0 0.0
        %274 = vmatpush1.msra.mxu0 0.0
        %275 = vmatprep.subr.mxu0 0.0
        %276 = vmatpush1.msra.mxu0 0.0
        %277 = vmatprep.subr.mxu0 0.0
        %278 = vmatpush1.msra.mxu0 0.0
        %279 = vmatprep.subr.mxu0 0.0
        %280 = vmatpush1.msra.mxu0 0.0
        %281 = vmatprep.subr.mxu0 0.0
        %282 = vmatpush1.msra.mxu0 0.0
        %283 = vmatprep.subr.mxu0 0.0
        %284 = vmatpush1.msra.mxu0 0.0
        %285 = vmatprep.subr.mxu0 0.0
        %286 = vmatpush1.msra.mxu0 0.0
        %287 = vmatprep.subr.mxu0 0.0
        %288 = vmatpush1.msra.mxu0 0.0
        %289 = vmatprep.subr.mxu0 0.0
        %290 = vmatpush1.msra.mxu0 0.0
        %291 = vmatprep.subr.mxu0 0.0
        %292 = vmatpush1.msra.mxu0 0.0
        %293 = vmatprep.subr.mxu0 0.0
        %294 = vmatpush1.msra.mxu0 0.0
        %295 = vmatprep.subr.mxu0 0.0
        %296 = vmatpush1.msra.mxu0 0.0
        %297 = vmatprep.subr.mxu0 0.0
        %298 = vmatpush1.msra.mxu0 0.0
        %299 = vmatprep.subr.mxu0 0.0
        %300 = vmatpush1.msra.mxu0 0.0
        %301 = vmatprep.subr.mxu0 0.0
        %302 = vmatpush1.msra.mxu0 0.0
        %303 = vmatprep.mubr.f32.mxu0 0.0
        %304 = vmatmul.mubr.f32.gmra.mrb[0].mxu0 %v237
        %v305 = vpop.f32.mrb[0].mxu0
        %v306 = vadd.f32 0.0, %v305
        %v307 = vpop.f32.mrb[0].mxu0
        %308 = vdwg.mxu0
        %v309 = vmax.f32 %v306, 0.0
        %vm310 = vcmask 15360
        %v312 = vsel %vm310, %v231, 0
        %v315 = vsel %vm310, %v232, 0
        %v318 = vsel %vm310, %v233, 0
        %v321 = vsel %vm310, %v234, 0
        %vm323 = vcmask 1041408
        %v325 = vsel %vm323, %v309, 0
        %327 = vmatprep.subr.mxu0 0.0
        %328 = vmatpush1.msra.mxu0 %v325
        %329 = vmatprep.subr.mxu0 0.0
        %330 = vmatpush1.msra.mxu0 0.0
        %331 = vmatprep.subr.mxu0 0.0
        %332 = vmatpush1.msra.mxu0 0.0
        %333 = vmatprep.subr.mxu0 0.0
        %334 = vmatpush1.msra.mxu0 0.0
        %335 = vmatprep.subr.mxu0 0.0
        %336 = vmatpush1.msra.mxu0 0.0
        %337 = vmatprep.subr.mxu0 0.0
        %338 = vmatpush1.msra.mxu0 0.0
        %339 = vmatprep.subr.mxu0 0.0
        %340 = vmatpush1.msra.mxu0 0.0
        %341 = vmatprep.subr.mxu0 0.0
        %342 = vmatpush1.msra.mxu0 0.0
        %343 = vmatprep.subr.mxu0 0.0
        %344 = vmatpush1.msra.mxu0 0.0
        %345 = vmatprep.subr.mxu0 0.0
        %346 = vmatpush1.msra.mxu0 0.0
        %347 = vmatprep.subr.mxu0 0.0
        %348 = vmatpush1.msra.mxu0 0.0
        %349 = vmatprep.subr.mxu0 0.0
        %350 = vmatpush1.msra.mxu0 0.0
        %351 = vmatprep.subr.mxu0 0.0
        %352 = vmatpush1.msra.mxu0 0.0
        %353 = vmatprep.subr.mxu0 0.0
        %354 = vmatpush1.msra.mxu0 0.0
        %355 = vmatprep.subr.mxu0 0.0
        %356 = vmatpush1.msra.mxu0 0.0
        %357 = vmatprep.subr.mxu0 0.0
        %358 = vmatpush1.msra.mxu0 0.0
        %359 = vmatprep.subr.mxu0 0.0
        %360 = vmatpush1.msra.mxu0 0.0
        %361 = vmatprep.subr.mxu0 0.0
        %362 = vmatpush1.msra.mxu0 0.0
        %363 = vmatprep.subr.mxu0 0.0
        %364 = vmatpush1.msra.mxu0 0.0
        %365 = vmatprep.subr.mxu0 0.0
        %366 = vmatpush1.msra.mxu0 0.0
        %367 = vmatprep.subr.mxu0 0.0
        %368 = vmatpush1.msra.mxu0 0.0
        %369 = vmatprep.subr.mxu0 0.0
        %370 = vmatpush1.msra.mxu0 0.0
        %371 = vmatprep.subr.mxu0 0.0
        %372 = vmatpush1.msra.mxu0 0.0
        %373 = vmatprep.subr.mxu0 0.0
        %374 = vmatpush1.msra.mxu0 0.0
        %375 = vmatprep.subr.mxu0 0.0
        %376 = vmatpush1.msra.mxu0 0.0
        %377 = vmatprep.subr.mxu0 0.0
        %378 = vmatpush1.msra.mxu0 0.0
        %379 = vmatprep.subr.mxu0 0.0
        %380 = vmatpush1.msra.mxu0 0.0
        %381 = vmatprep.subr.mxu0 0.0
        %382 = vmatpush1.msra.mxu0 0.0
        %383 = vmatprep.subr.mxu0 0.0
        %384 = vmatpush1.msra.mxu0 0.0
        %385 = vmatprep.subr.mxu0 0.0
        %386 = vmatpush1.msra.mxu0 0.0
        %387 = vmatprep.subr.mxu0 0.0
        %388 = vmatpush1.msra.mxu0 0.0
        %389 = vmatprep.subr.mxu0 0.0
        %390 = vmatpush1.msra.mxu0 0.0
        %391 = vmatprep.mubr.f32.mxu0 0.0
        %392 = vmatmul.mubr.f32.gmra.mrb[0].mxu0 %v312
        %v393 = vpop.f32.mrb[0].mxu0
        %v394 = vadd.f32 0.0, %v393
        %v395 = vpop.f32.mrb[0].mxu0
        %396 = vmatprep.mubr.f32.mxu0 0.0
        %397 = vmatmul.mubr.f32.gmra.mrb[0].mxu0 %v315
        %v398 = vpop.f32.mrb[0].mxu0
        %v399 = vadd.f32 0.0, %v398
        %v400 = vpop.f32.mrb[0].mxu0
        %401 = vmatprep.mubr.f32.mxu0 0.0
        %402 = vmatmul.mubr.f32.gmra.mrb[0].mxu0 %v318
        %v403 = vpop.f32.mrb[0].mxu0
        %v404 = vadd.f32 0.0, %v403
        %v405 = vpop.f32.mrb[0].mxu0
        %406 = vmatprep.mubr.f32.mxu0 0.0
        %407 = vmatmul.mubr.f32.gmra.mrb[0].mxu0 %v321
        %v408 = vpop.f32.mrb[0].mxu0
        %v409 = vadd.f32 0.0, %v408
        %v410 = vpop.f32.mrb[0].mxu0
        %411 = vdwg.mxu0
        %416 = vrot.lane.b32.xlu0 %v394, 127
        %v417 = vpop.permute.xlu0 %416
        %418 = vrot.lane.b32.xlu0 %v399, 127
        %v419 = vpop.permute.xlu0 %418
        %420 = vrot.lane.b32.xlu0 %v404, 127
        %v421 = vpop.permute.xlu0 %420
        %422 = vrot.lane.b32.xlu0 %v409, 127
        %v423 = vpop.permute.xlu0 %422
        %v428 = vadd.f32 %v394, %v417
        %v429 = vadd.f32 %v399, %v419
        %v430 = vadd.f32 %v404, %v421
        %v431 = vadd.f32 %v409, %v423
        %v432 = vxor.u32 %v428, 2147483648
        %v433 = vxor.u32 %v429, 2147483648
        %v434 = vxor.u32 %v430, 2147483648
        %v435 = vxor.u32 %v431, 2147483648
        %v436 = vmul.f32 %v432, 1.442695
        %v437 = vpow.pop %v436
        %v438 = vmul.f32 %v433, 1.442695
        %v439 = vpow.pop %v438
        %v440 = vmul.f32 %v434, 1.442695
        %v441 = vpow.pop %v440
        %v442 = vmul.f32 %v435, 1.442695
        %v443 = vpow.pop %v442
        %v444 = vadd.f32 %v437, 1.0
        %v445 = vadd.f32 %v439, 1.0
        %v446 = vadd.f32 %v441, 1.0
        %v447 = vadd.f32 %v443, 1.0
        %v448 = vrcp.pop %v444
        %v449 = vmul.f32 1.0, %v448
        %v450 = vrcp.pop %v445
        %v451 = vmul.f32 1.0, %v450
        %v452 = vrcp.pop %v446
        %v453 = vmul.f32 1.0, %v452
        %v454 = vrcp.pop %v447
        %v455 = vmul.f32 1.0, %v454
        %457 = vset.pattern.permute.xlu0 0
        %458 = vperm.xlu0 %457, %v449
        %v459 = vpop.permute.xlu0 %458
        %462 = vset.pattern.permute.xlu0 0
        %463 = vperm.xlu0 %462, %v451
        %v464 = vpop.permute.xlu0 %463
        %467 = vset.pattern.permute.xlu0 0
        %468 = vperm.xlu0 %467, %v453
        %v469 = vpop.permute.xlu0 %468
        %472 = vset.pattern.permute.xlu0 0
        %473 = vperm.xlu0 %472, %v455
        %v474 = vpop.permute.xlu0 %473
        %v476 = vmul.f32 %v189, %v459
        %v477 = vmul.f32 %v190, %v459
        %v478 = vmul.f32 %v191, %v464
        %v479 = vmul.f32 %v192, %v464
        %v480 = vmul.f32 %v193, %v469
        %v481 = vmul.f32 %v194, %v469
        %v482 = vmul.f32 %v195, %v474
        %v483 = vmul.f32 %v196, %v474
        %484 = vst [vmem:[%s188] sm:$0xff] %v476
        %485 = vst [vmem:[%s188 + $0x8] sm:$0xff] %v477
        %486 = vst [vmem:[%s188 + $0x10] sm:$0xff] %v478
        %487 = vst [vmem:[%s188 + $0x18] sm:$0xff] %v479
        %488 = vst [vmem:[%s188 + $0x20] sm:$0xff] %v480
        %489 = vst [vmem:[%s188 + $0x28] sm:$0xff] %v481
        %490 = vst [vmem:[%s188 + $0x30] sm:$0xff] %v482
        %491 = vst [vmem:[%s188 + $0x38] sm:$0xff] %v483
        %s492 = sand.u32 %s96, 1
        %s493 = scalar_lea.sflag [#allocation4], %s492
        %s494 = sand.u32 %s96, 1
        %s495 = smul.addr %s494, 64
        %s496 = scalar_lea.vmem [#allocation5], %s495
        // Predicated region
        $region37: #{tpu_custom_call.1} parent=31 // pred_check
          %p497 = pneg %p106
        $region38: #{tpu_custom_call.1} parent=31 // pred_check_branch
          %499 = sbr.rel (%p497) target = $region40
        $region39: #{tpu_custom_call.1} parent=31 // pred_region
          %s501 = ssub.s32 1024, 1024
          %502 = vsyncadd %s493, %s501
          %s503 = smul.addr %s20, 8
          %s504 = smul.addr %s503, 128
          %s505 = scalar_lea.hbm %s3, %s504
          %s506 = sshll.u32 %s496, 4
          %s507 = int_to_ptr.vmem [resolvable:$true] %s506
          %512 = dma.vmem_to_hbm [thread:$0]  %s507, 1024, %s505, %s493, 256, 256, 16
        $region40: #{tpu_custom_call.1} parent=31 // pred_fallthru
          _
      $region32: #{tpu_custom_call.1} parent=5 // pred_fallthru
        _
      %p513 = scmp.le.s32.totalorder 2, %s15
      // Predicated region
      $region41: #{tpu_custom_call.1} parent=5 // pred_check
        %p514 = pneg %p513
      $region42: #{tpu_custom_call.1} parent=5 // pred_check_branch
        %516 = sbr.rel (%p514) target = $region44
      $region43: #{tpu_custom_call.1} parent=5 // pred_region
        %s517 = ssub.s32 %s15, 2
        // Predicated region
        $region45: #{tpu_custom_call.1} parent=43 // pred_check
          %p518 = pneg %p112
        $region46: #{tpu_custom_call.1} parent=43 // pred_check_branch
          %520 = sbr.rel (%p518) target = $region48
        $region47: #{tpu_custom_call.1} parent=43 // pred_region
          %s521 = sand.u32 %s97, 1
          %s522 = scalar_lea.sflag [#allocation4], %s521
          %s523 = sand.u32 %s97, 1
          %s524 = smul.addr %s523, 64
          %s525 = scalar_lea.vmem [#allocation5], %s524
          %526 = dma.done %s522, 1024
        $region48: #{tpu_custom_call.1} parent=43 // pred_fallthru
          _
      $region44: #{tpu_custom_call.1} parent=5 // pred_fallthru
        _
    $region6: #{tpu_custom_call.1} parent=1 // loop_footer
      %s19 = sadd.s32 1, %s15
    $region7: #{tpu_custom_call.1} parent=1 // loop_footer_branch
      %14 = sbr.rel target = $region3
    $region8: #{tpu_custom_call.1} parent=1 // loop_exit
      _
    %527 = vsyncpa [#allocation3], 1
    %s528 = scalar_lea.sflag [#allocation3], 1
    %529 = vsyncpa %s528, 1
    %530 = vsyncpa [#allocation4], 1
    %s531 = scalar_lea.sflag [#allocation4], 1
    %532 = vsyncpa %s531, 1

</llo_original>
